<compile_context>
chip_gen: v7x
topology: tpu7x:2x2x1
jax: 0.10.0
libtpu: 0.0.40
codegen_flags: <defaults>
</compile_context>

<pallas_src>
import functools

import jax
import jax.numpy as jnp
from jax import lax
from jax.experimental import pallas as pl
from jax.experimental.pallas import tpu as pltpu

_SQRT_HALF = 0.7071067811865476


def _round_up(x, n):
    return ((x + n - 1) // n) * n


def _cdiv(a, b):
    return (a + b - 1) // b


def _mlp_kernel(x_ref, w1_ref, b1_ref, w2_ref, b2_ref, o_ref, acc_ref, *,
                approximate_gelu):
    # x_ref : (tm, C)  bf16     w1_ref: (C, tH)  bf16     b1_ref: (1, tH) f32
    # w2_ref: (tH, O)  bf16     b2_ref: (1, O)   f32
    # o_ref : (tm, O)  out dtype               acc_ref: (tm, O) f32 (resident across k)
    k = pl.program_id(1)

    @pl.when(k == 0)
    def _():
        acc_ref[...] = jnp.zeros_like(acc_ref)

    # First Linear (this hidden chunk) on the MXU: bf16 x bf16 -> f32 accumulation.
    h = jnp.dot(x_ref[...], w1_ref[...], preferred_element_type=jnp.float32)
    h = h + b1_ref[...]
    if approximate_gelu:
        # tanh GELU -> transcendental goes to the EUP slot, keeps VALU free.
        h = jax.nn.gelu(h, approximate=True)
    else:
        # Exact erf GELU (matches torch.nn.GELU() default, approximate='none').
        h = 0.5 * h * (1.0 + lax.erf(h * _SQRT_HALF))
    # Second Linear: contract this hidden chunk into the f32 accumulator.
    acc_ref[...] += jnp.dot(h.astype(w2_ref.dtype), w2_ref[...],
                            preferred_element_type=jnp.float32)

    @pl.when(k == pl.num_programs(1) - 1)
    def _():
        o_ref[...] = (acc_ref[...] + b2_ref[...]).astype(o_ref.dtype)


def mlp_pallas(x, w1, b1, w2, b2, *, tm=None, compute_dtype=jnp.bfloat16,
               approximate_gelu=True):
    """x: (..., in_features); w1: (in, hidden); w2: (hidden, out); biases 1-D."""
    in_f, hid_f = w1.shape
    out_f = w2.shape[1]
    orig_shape = x.shape
    out_dtype = x.dtype

    x2d = x.reshape(-1, in_f)
    m = x2d.shape[0]

    csz = jnp.dtype(compute_dtype).itemsize
    osz = jnp.dtype(out_dtype).itemsize

    try:
        vmem_cap = int(pltpu.get_tpu_info().vmem_capacity_bytes)
    except Exception:
        vmem_cap = 64 * 1024 * 1024  # conservative: v7x per-TensorCore VMEM

    # Lane-dense (multiple-of-128) hidden / output feature dims (zero padded in the wrapper).
    H = _round_up(hid_f, 128)
    O = _round_up(out_f, 128)

    # Row tile: 512 on the 128-MiB-VMEM parts (v5e/v6e), 256 on 64-MiB (v7x). Multiple of 16
    # for bf16 sublane packing, clipped for tiny inputs.
    if tm is None:
        tm = 512 if vmem_cap >= (96 << 20) else 256
    tm = max(16, min((int(tm) // 16) * 16, _round_up(m, 16)))

    def est_vmem(tm_, th_, nbuf_w):
        x_b = 2 * tm_ * in_f * csz                    # double-buffered activation tiles
        o_b = 2 * tm_ * O * osz                       # double-buffered output tiles
        w_b = nbuf_w * (in_f * th_ + th_ * O) * csz   # weight chunk buffers
        b_b = nbuf_w * th_ * 4 + O * 4                # bias chunks (f32)
        acc_b = tm_ * O * 4                           # f32 accumulator scratch
        tmp_b = tm_ * th_ * (2 * 4 + csz)             # f32 hidden + gelu temp + bf16 cast copy
        return x_b + o_b + w_b + b_b + acc_b + tmp_b + (2 << 20)

    budget = int(0.80 * vmem_cap)

    # Prefer a single fully-resident hidden chunk (weights single-buffered); otherwise tile the
    # hidden axis with double-buffered weight chunks; shrink the row tile only as a last resort.
    th, nbuf_w = H, 1
    if est_vmem(tm, th, nbuf_w) > budget:
        nbuf_w = 2
        cands = [c for c in (1024, 896, 768, 640, 512, 384, 256, 128)
                 if c <= H and H % c == 0]
        th = next((c for c in cands if est_vmem(tm, c, nbuf_w) <= budget), 128)
        while tm > 64 and est_vmem(tm, th, nbuf_w) > budget:
            tm = max(64, ((tm // 2) // 16) * 16)

    grid_h = H // th
    grid_m = _cdiv(m, tm)
    # On dual-TensorCore parts (v7x) a size-1 "parallel" row grid leaves one core idle; split
    # larger inputs into at least two row tiles (one extra grid step costs ~0.35 us).
    if grid_m == 1 and m > 256:
        tm = max(128, _round_up(_cdiv(m, 2), 16))
        grid_m = _cdiv(m, tm)

    vmem_limit = int(min(int(0.875 * vmem_cap),
                         max(32 << 20, int(1.2 * est_vmem(tm, th, nbuf_w)))))

    # bf16 operands for the MXU; biases stay f32 so bias-add + GELU run in f32.
    xc = x2d.astype(compute_dtype)
    w1c = jnp.pad(w1.astype(compute_dtype), ((0, 0), (0, H - hid_f)))
    b1c = jnp.pad(b1.astype(jnp.float32), (0, H - hid_f)).reshape(1, H)
    w2c = jnp.pad(w2.astype(compute_dtype), ((0, H - hid_f), (0, O - out_f)))
    b2c = jnp.pad(b2.astype(jnp.float32), (0, O - out_f)).reshape(1, O)

    cost = pl.CostEstimate(
        flops=2 * m * (in_f * H + H * O),
        transcendentals=m * H if approximate_gelu else 0,
        bytes_accessed=(xc.size * csz + w1c.size * csz + w2c.size * csz
                        + (H + O) * 4 + m * O * osz))

    kernel = functools.partial(_mlp_kernel, approximate_gelu=approximate_gelu)

    def build_call(single_buffer_const):
        def spec(shape, imap, constant):
            if constant and single_buffer_const:
                # Constant block index -> Pallas never re-DMAs it; drop the second buffer.
                return pl.BlockSpec(shape, imap, pipeline_mode=pl.Buffered(1))
            return pl.BlockSpec(shape, imap)

        w_const = grid_h == 1
        return pl.pallas_call(
            kernel,
            out_shape=jax.ShapeDtypeStruct((m, O), out_dtype),
            grid_spec=pltpu.PrefetchScalarGridSpec(
                num_scalar_prefetch=0,
                grid=(grid_m, grid_h),
                in_specs=[
                    pl.BlockSpec((tm, in_f), lambda i, k: (i, 0)),
                    spec((in_f, th), lambda i, k: (0, k), w_const),
                    spec((1, th), lambda i, k: (0, k), w_const),
                    spec((th, O), lambda i, k: (k, 0), w_const),
                    spec((1, O), lambda i, k: (0, 0), True),
                ],
                out_specs=pl.BlockSpec((tm, O), lambda i, k: (i, 0)),
                scratch_shapes=[pltpu.VMEM((tm, O), jnp.float32)],
            ),
            compiler_params=pltpu.CompilerParams(
                dimension_semantics=("parallel", "arbitrary"),
                vmem_limit_bytes=vmem_limit,
            ),
            cost_estimate=cost,
        )

    try:
        out2d = build_call(True)(xc, w1c, b1c, w2c, b2c)
    except Exception:
        # Fallback for toolchains that reject pipeline_mode=pl.Buffered(1) on a BlockSpec.
        out2d = build_call(False)(xc, w1c, b1c, w2c, b2c)

    if O != out_f:
        out2d = out2d[:, :out_f]
    return out2d.reshape(*orig_shape[:-1], out_f)


def init_mlp_params(key, in_features, hidden_features, out_features, dtype=jnp.float32):
    """Synthetic init mirroring torch nn.Linear; weights stored pre-transposed (in, out)."""
    k1, k2, k3, k4 = jax.random.split(key, 4)
    s1 = 1.0 / jnp.sqrt(in_features)
    s2 = 1.0 / jnp.sqrt(hidden_features)
    w1 = jax.random.uniform(k1, (in_features, hidden_features), dtype, -s1, s1)
    b1 = jax.random.uniform(k2, (hidden_features,), dtype, -s1, s1)
    w2 = jax.random.uniform(k3, (hidden_features, out_features), dtype, -s2, s2)
    b2 = jax.random.uniform(k4, (out_features,), dtype, -s2, s2)
    return w1, b1, w2, b2


def _gelu(h, approximate):
    if approximate:
        return jax.nn.gelu(h, approximate=True)
    return 0.5 * h * (1.0 + lax.erf(h * _SQRT_HALF))


def mlp_ref_f32(x, w1, b1, w2, b2):
    """Pure-f32, exact-erf GELU reference (== the torch module in f32)."""
    h = x @ w1 + b1
    h = _gelu(h, approximate=False)
    return h @ w2 + b2


def mlp_ref_bf16(x, w1, b1, w2, b2, approximate_gelu=True):
    """Reference with the same bf16-operand / f32-accumulation casts as the kernel."""
    xc = x.astype(jnp.bfloat16)
    h = jnp.dot(xc, w1.astype(jnp.bfloat16), preferred_element_type=jnp.float32)
    h = h + b1.astype(jnp.float32)
    h = _gelu(h, approximate=approximate_gelu)
    o = jnp.dot(h.astype(jnp.bfloat16), w2.astype(jnp.bfloat16),
                preferred_element_type=jnp.float32)
    return (o + b2.astype(jnp.float32)).astype(x.dtype)


if __name__ == "__main__":
    # Small shapes consistent with the module: channels-last tokens (B, N, C).
    B, N = 2, 8
    in_features, hidden_features, out_features = 32, 64, 32
    # dropout_p = 0.0 (module default) -> identity.

    key = jax.random.PRNGKey(0)
    kx, kp = jax.random.split(key)
    x = jax.random.normal(kx, (B, N, in_features), jnp.float32)
    w1, b1, w2, b2 = init_mlp_params(kp, in_features, hidden_features, out_features)

    out = mlp_pallas(x, w1, b1, w2, b2)
    out = jax.block_until_ready(out)

    ref_bf16 = mlp_ref_bf16(x, w1, b1, w2, b2, approximate_gelu=True)
    ref_f32 = mlp_ref_f32(x, w1, b1, w2, b2)

    assert out.shape == (B, N, out_features), out.shape
    # Tight check vs a reference with identical bf16/f32 casts and the same GELU form.
    assert jnp.allclose(out, ref_bf16, atol=1e-2, rtol=1e-2), \
        float(jnp.max(jnp.abs(out - ref_bf16)))
    # Looser sanity check vs the pure-f32 torch-equivalent math (bf16 rounding + tanh GELU).
    assert jnp.allclose(out, ref_f32, atol=5e-2, rtol=5e-2), \
        float(jnp.max(jnp.abs(out - ref_f32)))

    print("KERNEL_OK")
</pallas_src>

<mosaic_0001>
module attributes {stable_mosaic.version = 11 : i64} {
  func.func @_mlp_kernel(%arg0: i32, %arg1: i32, %arg2: memref<16x32xbf16, #tpu.memory_space<vmem>>, %arg3: memref<32x128xbf16, #tpu.memory_space<vmem>>, %arg4: memref<1x128xf32, #tpu.memory_space<vmem>>, %arg5: memref<128x128xbf16, #tpu.memory_space<vmem>>, %arg6: memref<1x128xf32, #tpu.memory_space<vmem>>, %arg7: memref<16x128xf32, #tpu.memory_space<vmem>>, %arg8: memref<16x128xf32, #tpu.memory_space<vmem>>) attributes {dimension_semantics = [#tpu.dimension_semantics<parallel>, #tpu.dimension_semantics<arbitrary>], iteration_bounds = array<i64: 1, 1>, scalar_prefetch = 0 : i64, scratch_operands = 1 : i64, tpu.core_type = #tpu.core_type<tc>, window_params = [{transform_indices = @transform_0, window_bounds = array<i64: 16, 32>}, {pipeline_mode = #tpu.pipeline_mode<synchronous>, transform_indices = @transform_1, window_bounds = array<i64: 32, 128>}, {pipeline_mode = #tpu.pipeline_mode<synchronous>, transform_indices = @transform_2, window_bounds = array<i64: 1, 128>}, {pipeline_mode = #tpu.pipeline_mode<synchronous>, transform_indices = @transform_3, window_bounds = array<i64: 128, 128>}, {pipeline_mode = #tpu.pipeline_mode<synchronous>, transform_indices = @transform_4, window_bounds = array<i64: 1, 128>}, {transform_indices = @transform_5, window_bounds = array<i64: 16, 128>}]} {
    %c0_i32 = arith.constant 0 : i32
    %0 = arith.cmpi eq, %arg1, %c0_i32 : i32
    %1 = arith.extui %0 : i1 to i32
    %c0_i32_0 = arith.constant 0 : i32
    %2 = arith.cmpi ne, %1, %c0_i32_0 : i32
    scf.if %2 {
      %cst_19 = arith.constant 0.000000e+00 : f32
      %31 = vector.broadcast %cst_19 : f32 to vector<16x128xf32>
      %c0_20 = arith.constant 0 : index
      %c0_21 = arith.constant 0 : index
      %32 = vector.load %arg8[%c0_20, %c0_21] : memref<16x128xf32, #tpu.memory_space<vmem>>, vector<16x128xf32>
      tpu.vector_store %arg8[%c0_20, %c0_21], %31 {strides = array<i32>} : memref<16x128xf32, #tpu.memory_space<vmem>>, vector<16x128xf32>,
    } else {
    }
    %c0 = arith.constant 0 : index
    %c0_1 = arith.constant 0 : index
    %3 = vector.load %arg2[%c0, %c0_1] : memref<16x32xbf16, #tpu.memory_space<vmem>>, vector<16x32xbf16>
    %c0_2 = arith.constant 0 : index
    %c0_3 = arith.constant 0 : index
    %4 = vector.load %arg3[%c0_2, %c0_3] : memref<32x128xbf16, #tpu.memory_space<vmem>>, vector<32x128xbf16>
    %cst = arith.constant dense<0.000000e+00> : vector<16x128xf32>
    %5 = tpu.matmul %3, %4, %cst {dimension_numbers = #tpu.dot_dimension_numbers<[1], [0], [0], [1], [0, 0, 1, 1], [], []>} : vector<16x32xbf16>, vector<32x128xbf16>, vector<16x128xf32> -> vector<16x128xf32>
    %c0_4 = arith.constant 0 : index
    %c0_5 = arith.constant 0 : index
    %6 = vector.load %arg4[%c0_4, %c0_5] : memref<1x128xf32, #tpu.memory_space<vmem>>, vector<1x128xf32>
    %7 = vector.broadcast %6 : vector<1x128xf32> to vector<16x128xf32>
    %8 = arith.addf %5, %7 : vector<16x128xf32>
    %9 = arith.mulf %8, %8 : vector<16x128xf32>
    %10 = arith.mulf %8, %9 : vector<16x128xf32>
    %cst_6 = arith.constant 4.471500e-02 : f32
    %11 = vector.broadcast %cst_6 : f32 to vector<16x128xf32>
    %12 = arith.mulf %11, %10 : vector<16x128xf32>
    %13 = arith.addf %8, %12 : vector<16x128xf32>
    %cst_7 = arith.constant 0.797884583 : f32
    %14 = vector.broadcast %cst_7 : f32 to vector<16x128xf32>
    %15 = arith.mulf %14, %13 : vector<16x128xf32>
    %16 = math.tanh %15 : vector<16x128xf32>
    %cst_8 = arith.constant 1.000000e+00 : f32
    %17 = vector.broadcast %cst_8 : f32 to vector<16x128xf32>
    %18 = arith.addf %17, %16 : vector<16x128xf32>
    %cst_9 = arith.constant 5.000000e-01 : f32
    %19 = vector.broadcast %cst_9 : f32 to vector<16x128xf32>
    %20 = arith.mulf %19, %18 : vector<16x128xf32>
    %21 = arith.mulf %8, %20 : vector<16x128xf32>
    %c0_10 = arith.constant 0 : index
    %c0_11 = arith.constant 0 : index
    %22 = vector.load %arg8[%c0_10, %c0_11] : memref<16x128xf32, #tpu.memory_space<vmem>>, vector<16x128xf32>
    %23 = arith.truncf %21 : vector<16x128xf32> to vector<16x128xbf16>
    %c0_12 = arith.constant 0 : index
    %c0_13 = arith.constant 0 : index
    %24 = vector.load %arg5[%c0_12, %c0_13] : memref<128x128xbf16, #tpu.memory_space<vmem>>, vector<128x128xbf16>
    %cst_14 = arith.constant dense<0.000000e+00> : vector<16x128xf32>
    %25 = tpu.matmul %23, %24, %cst_14 {dimension_numbers = #tpu.dot_dimension_numbers<[1], [0], [0], [1], [0, 0, 1, 1], [], []>} : vector<16x128xbf16>, vector<128x128xbf16>, vector<16x128xf32> -> vector<16x128xf32>
    %26 = arith.addf %22, %25 : vector<16x128xf32>
    %c0_15 = arith.constant 0 : index
    %c0_16 = arith.constant 0 : index
    %27 = vector.load %arg8[%c0_15, %c0_16] : memref<16x128xf32, #tpu.memory_space<vmem>>, vector<16x128xf32>
    tpu.vector_store %arg8[%c0_15, %c0_16], %26 {strides = array<i32>} : memref<16x128xf32, #tpu.memory_space<vmem>>, vector<16x128xf32>,
    %c0_i32_17 = arith.constant 0 : i32
    %28 = arith.cmpi eq, %arg1, %c0_i32_17 : i32
    %29 = arith.extui %28 : i1 to i32
    %c0_i32_18 = arith.constant 0 : i32
    %30 = arith.cmpi ne, %29, %c0_i32_18 : i32
    scf.if %30 {
      %c0_19 = arith.constant 0 : index
      %c0_20 = arith.constant 0 : index
      %31 = vector.load %arg8[%c0_19, %c0_20] : memref<16x128xf32, #tpu.memory_space<vmem>>, vector<16x128xf32>
      %c0_21 = arith.constant 0 : index
      %c0_22 = arith.constant 0 : index
      %32 = vector.load %arg6[%c0_21, %c0_22] : memref<1x128xf32, #tpu.memory_space<vmem>>, vector<1x128xf32>
      %33 = vector.broadcast %32 : vector<1x128xf32> to vector<16x128xf32>
      %34 = arith.addf %31, %33 : vector<16x128xf32>
      %c0_23 = arith.constant 0 : index
      %c0_24 = arith.constant 0 : index
      %35 = vector.load %arg7[%c0_23, %c0_24] : memref<16x128xf32, #tpu.memory_space<vmem>>, vector<16x128xf32>
      tpu.vector_store %arg7[%c0_23, %c0_24], %34 {strides = array<i32>} : memref<16x128xf32, #tpu.memory_space<vmem>>, vector<16x128xf32>,
    } else {
    }
    return
  }
  func.func @transform_0(%arg0: i32, %arg1: i32) -> (i32, i32) {
    %c0_i32 = arith.constant 0 : i32
    %c0_i32_0 = arith.constant 0 : i32
    return %arg0, %c0_i32 : i32, i32
  }
  func.func @transform_1(%arg0: i32, %arg1: i32) -> (i32, i32) {
    %c0_i32 = arith.constant 0 : i32
    %c0_i32_0 = arith.constant 0 : i32
    return %c0_i32, %arg1 : i32, i32
  }
  func.func @transform_2(%arg0: i32, %arg1: i32) -> (i32, i32) {
    %c0_i32 = arith.constant 0 : i32
    %c0_i32_0 = arith.constant 0 : i32
    return %c0_i32, %arg1 : i32, i32
  }
  func.func @transform_3(%arg0: i32, %arg1: i32) -> (i32, i32) {
    %c0_i32 = arith.constant 0 : i32
    %c0_i32_0 = arith.constant 0 : i32
    return %arg1, %c0_i32 : i32, i32
  }
  func.func @transform_4(%arg0: i32, %arg1: i32) -> (i32, i32) {
    %c0_i32 = arith.constant 0 : i32
    %c0_i32_0 = arith.constant 0 : i32
    %c0_i32_1 = arith.constant 0 : i32
    return %c0_i32, %c0_i32_0 : i32, i32
  }
  func.func @transform_5(%arg0: i32, %arg1: i32) -> (i32, i32) {
    %c0_i32 = arith.constant 0 : i32
    %c0_i32_0 = arith.constant 0 : i32
    return %arg0, %c0_i32 : i32, i32
  }
}

module attributes {stable_mosaic.version = 11 : i64} {
  func.func @_mlp_kernel(%arg0: i32, %arg1: i32, %arg2: memref<16x32xbf16, #tpu.memory_space<vmem>>, %arg3: memref<32x128xbf16, #tpu.memory_space<vmem>>, %arg4: memref<1x128xf32, #tpu.memory_space<vmem>>, %arg5: memref<128x128xbf16, #tpu.memory_space<vmem>>, %arg6: memref<1x128xf32, #tpu.memory_space<vmem>>, %arg7: memref<16x128xf32, #tpu.memory_space<vmem>>, %arg8: memref<16x128xf32, #tpu.memory_space<vmem>>) attributes {dimension_semantics = [#tpu.dimension_semantics<parallel>, #tpu.dimension_semantics<arbitrary>], iteration_bounds = array<i64: 1, 1>, scalar_prefetch = 0 : i64, scratch_operands = 1 : i64, tpu.core_type = #tpu.core_type<tc>, window_params = [{transform_indices = @transform_0, window_bounds = array<i64: 16, 32>}, {transform_indices = @transform_1, window_bounds = array<i64: 32, 128>}, {transform_indices = @transform_2, window_bounds = array<i64: 1, 128>}, {transform_indices = @transform_3, window_bounds = array<i64: 128, 128>}, {pipeline_mode = #tpu.pipeline_mode<synchronous>, transform_indices = @transform_4, window_bounds = array<i64: 1, 128>}, {transform_indices = @transform_5, window_bounds = array<i64: 16, 128>}]} {
    %c0_i32 = arith.constant 0 : i32
    %0 = arith.cmpi eq, %arg1, %c0_i32 : i32
    %1 = arith.extui %0 : i1 to i32
    %c0_i32_0 = arith.constant 0 : i32
    %2 = arith.cmpi ne, %1, %c0_i32_0 : i32
    scf.if %2 {
      %cst_19 = arith.constant 0.000000e+00 : f32
      %31 = vector.broadcast %cst_19 : f32 to vector<16x128xf32>
      %c0_20 = arith.constant 0 : index
      %c0_21 = arith.constant 0 : index
      %32 = vector.load %arg8[%c0_20, %c0_21] : memref<16x128xf32, #tpu.memory_space<vmem>>, vector<16x128xf32>
      tpu.vector_store %arg8[%c0_20, %c0_21], %31 {strides = array<i32>} : memref<16x128xf32, #tpu.memory_space<vmem>>, vector<16x128xf32>,
    } else {
    }
    %c0 = arith.constant 0 : index
    %c0_1 = arith.constant 0 : index
    %3 = vector.load %arg2[%c0, %c0_1] : memref<16x32xbf16, #tpu.memory_space<vmem>>, vector<16x32xbf16>
    %c0_2 = arith.constant 0 : index
    %c0_3 = arith.constant 0 : index
    %4 = vector.load %arg3[%c0_2, %c0_3] : memref<32x128xbf16, #tpu.memory_space<vmem>>, vector<32x128xbf16>
    %cst = arith.constant dense<0.000000e+00> : vector<16x128xf32>
    %5 = tpu.matmul %3, %4, %cst {dimension_numbers = #tpu.dot_dimension_numbers<[1], [0], [0], [1], [0, 0, 1, 1], [], []>} : vector<16x32xbf16>, vector<32x128xbf16>, vector<16x128xf32> -> vector<16x128xf32>
    %c0_4 = arith.constant 0 : index
    %c0_5 = arith.constant 0 : index
    %6 = vector.load %arg4[%c0_4, %c0_5] : memref<1x128xf32, #tpu.memory_space<vmem>>, vector<1x128xf32>
    %7 = vector.broadcast %6 : vector<1x128xf32> to vector<16x128xf32>
    %8 = arith.addf %5, %7 : vector<16x128xf32>
    %9 = arith.mulf %8, %8 : vector<16x128xf32>
    %10 = arith.mulf %8, %9 : vector<16x128xf32>
    %cst_6 = arith.constant 4.471500e-02 : f32
    %11 = vector.broadcast %cst_6 : f32 to vector<16x128xf32>
    %12 = arith.mulf %11, %10 : vector<16x128xf32>
    %13 = arith.addf %8, %12 : vector<16x128xf32>
    %cst_7 = arith.constant 0.797884583 : f32
    %14 = vector.broadcast %cst_7 : f32 to vector<16x128xf32>
    %15 = arith.mulf %14, %13 : vector<16x128xf32>
    %16 = math.tanh %15 : vector<16x128xf32>
    %cst_8 = arith.constant 1.000000e+00 : f32
    %17 = vector.broadcast %cst_8 : f32 to vector<16x128xf32>
    %18 = arith.addf %17, %16 : vector<16x128xf32>
    %cst_9 = arith.constant 5.000000e-01 : f32
    %19 = vector.broadcast %cst_9 : f32 to vector<16x128xf32>
    %20 = arith.mulf %19, %18 : vector<16x128xf32>
    %21 = arith.mulf %8, %20 : vector<16x128xf32>
    %c0_10 = arith.constant 0 : index
    %c0_11 = arith.constant 0 : index
    %22 = vector.load %arg8[%c0_10, %c0_11] : memref<16x128xf32, #tpu.memory_space<vmem>>, vector<16x128xf32>
    %23 = arith.truncf %21 : vector<16x128xf32> to vector<16x128xbf16>
    %c0_12 = arith.constant 0 : index
    %c0_13 = arith.constant 0 : index
    %24 = vector.load %arg5[%c0_12, %c0_13] : memref<128x128xbf16, #tpu.memory_space<vmem>>, vector<128x128xbf16>
    %cst_14 = arith.constant dense<0.000000e+00> : vector<16x128xf32>
    %25 = tpu.matmul %23, %24, %cst_14 {dimension_numbers = #tpu.dot_dimension_numbers<[1], [0], [0], [1], [0, 0, 1, 1], [], []>} : vector<16x128xbf16>, vector<128x128xbf16>, vector<16x128xf32> -> vector<16x128xf32>
    %26 = arith.addf %22, %25 : vector<16x128xf32>
    %c0_15 = arith.constant 0 : index
    %c0_16 = arith.constant 0 : index
    %27 = vector.load %arg8[%c0_15, %c0_16] : memref<16x128xf32, #tpu.memory_space<vmem>>, vector<16x128xf32>
    tpu.vector_store %arg8[%c0_15, %c0_16], %26 {strides = array<i32>} : memref<16x128xf32, #tpu.memory_space<vmem>>, vector<16x128xf32>,
    %c0_i32_17 = arith.constant 0 : i32
    %28 = arith.cmpi eq, %arg1, %c0_i32_17 : i32
    %29 = arith.extui %28 : i1 to i32
    %c0_i32_18 = arith.constant 0 : i32
    %30 = arith.cmpi ne, %29, %c0_i32_18 : i32
    scf.if %30 {
      %c0_19 = arith.constant 0 : index
      %c0_20 = arith.constant 0 : index
      %31 = vector.load %arg8[%c0_19, %c0_20] : memref<16x128xf32, #tpu.memory_space<vmem>>, vector<16x128xf32>
      %c0_21 = arith.constant 0 : index
      %c0_22 = arith.constant 0 : index
      %32 = vector.load %arg6[%c0_21, %c0_22] : memref<1x128xf32, #tpu.memory_space<vmem>>, vector<1x128xf32>
      %33 = vector.broadcast %32 : vector<1x128xf32> to vector<16x128xf32>
      %34 = arith.addf %31, %33 : vector<16x128xf32>
      %c0_23 = arith.constant 0 : index
      %c0_24 = arith.constant 0 : index
      %35 = vector.load %arg7[%c0_23, %c0_24] : memref<16x128xf32, #tpu.memory_space<vmem>>, vector<16x128xf32>
      tpu.vector_store %arg7[%c0_23, %c0_24], %34 {strides = array<i32>} : memref<16x128xf32, #tpu.memory_space<vmem>>, vector<16x128xf32>,
    } else {
    }
    return
  }
  func.func @transform_0(%arg0: i32, %arg1: i32) -> (i32, i32) {
    %c0_i32 = arith.constant 0 : i32
    %c0_i32_0 = arith.constant 0 : i32
    return %arg0, %c0_i32 : i32, i32
  }
  func.func @transform_1(%arg0: i32, %arg1: i32) -> (i32, i32) {
    %c0_i32 = arith.constant 0 : i32
    %c0_i32_0 = arith.constant 0 : i32
    return %c0_i32, %arg1 : i32, i32
  }
  func.func @transform_2(%arg0: i32, %arg1: i32) -> (i32, i32) {
    %c0_i32 = arith.constant 0 : i32
    %c0_i32_0 = arith.constant 0 : i32
    return %c0_i32, %arg1 : i32, i32
  }
  func.func @transform_3(%arg0: i32, %arg1: i32) -> (i32, i32) {
    %c0_i32 = arith.constant 0 : i32
    %c0_i32_0 = arith.constant 0 : i32
    return %arg1, %c0_i32 : i32, i32
  }
  func.func @transform_4(%arg0: i32, %arg1: i32) -> (i32, i32) {
    %c0_i32 = arith.constant 0 : i32
    %c0_i32_0 = arith.constant 0 : i32
    %c0_i32_1 = arith.constant 0 : i32
    return %c0_i32, %c0_i32_0 : i32, i32
  }
  func.func @transform_5(%arg0: i32, %arg1: i32) -> (i32, i32) {
    %c0_i32 = arith.constant 0 : i32
    %c0_i32_0 = arith.constant 0 : i32
    return %arg0, %c0_i32 : i32, i32
  }
}

</mosaic_0001>

<llo_original>
// kernel: tpu_custom_call.1
$region0: #{tpu_custom_call.1}
  #allocation0 [shape = 'u32[]', space=smem, size = 0x4, offset = 0x4, fixed_abs, tag = 'smem constant byte address 0x4 - core index']
  #allocation1 [shape = 'u32[144,128]{1,0:T(1,128)}', space=vmem, size = 0x12000, scoped, tag = 'internal scratch']
  #allocation2 [shape = 'f32[16,128]{1,0:T(8,128)}', space=vmem, size = 0x2000, scoped, tag = 'scratch operand']
  %s0 = inlined_call_operand.hbm [shape: bf16[16,32], index: 0, kind: input, shape index: {}]
  %s1 = inlined_call_operand.hbm [shape: bf16[32,128], index: 1, kind: input, shape index: {}]
  %s2 = inlined_call_operand.vmem [shape: f32[1,128], index: 2, kind: input, shape index: {}]
  %s3 = inlined_call_operand.hbm [shape: bf16[128,128], index: 3, kind: input, shape index: {}]
  %s4 = inlined_call_operand.vmem [shape: f32[1,128], index: 4, kind: input, shape index: {}]
  %s5 = inlined_call_operand.hbm [shape: f32[16,128], index: 5, kind: output, shape index: {}]
  %s6 = sld [smem:[#allocation0]]
  $region50: #{tpu_custom_call.1} parent=0
    _
  %s8 = ssub.s32 1, %s6
  %s9 = scalar_select 0, %s8, %s6
  $region1: #{tpu_custom_call.1} parent=0
    #allocation3 [shape = 'u8[4096]{0}', space=vmem, size = 0x1000, scoped, tag = 'input window, operand 0, single buffered']
    #allocation4 [shape = 's32[1]{0}', space=sflag, size = 0x4, scoped, tag = 'scoped memory for tpu_custom_call.1']
    #allocation5 [shape = 's32[1]{0}', space=sflag, size = 0x4, scoped, tag = 'scoped memory for tpu_custom_call.1']
    #allocation6 [shape = 'u8[8192]{0}', space=vmem, size = 0x2000, scoped, tag = 'input window, operand 1, single buffered']
    #allocation7 [shape = 's32[1]{0}', space=sflag, size = 0x4, scoped, tag = 'scoped memory for tpu_custom_call.1']
    #allocation8 [shape = 'u8[32768]{0}', space=vmem, size = 0x8000, scoped, tag = 'input window, operand 3, single buffered']
    #allocation9 [shape = 'u8[8192]{0}', space=vmem, size = 0x2000, scoped, tag = 'output window, operand 0, single buffered']
    %10 = vsyncpa [#allocation4], 0
    %11 = vsyncpa [#allocation7], 0
    %12 = vsyncpa [#allocation5], 0
    // Predicated region
    $region2: #{tpu_custom_call.1} parent=1 // pred_check
      _
    $region3: #{tpu_custom_call.1} parent=1 // pred_check_branch
      %14 = sbr.rel (0) target = $region5
    $region4: #{tpu_custom_call.1} parent=1 // pred_region
      %s16 = ssub.s32 128, 128
      %17 = vsyncadd [#allocation4], %s16
      %s18 = sshll.u32 [#allocation3], 4
      %s19 = int_to_ptr.vmem [resolvable:$true] %s18
      %24 = dma.hbm_to_vmem [thread:$0]  %s0, 128, %s19, [#allocation4], 64, 64, 4
    $region5: #{tpu_custom_call.1} parent=1 // pred_fallthru
      _
    // Predicated region
    $region6: #{tpu_custom_call.1} parent=1 // pred_check
      _
    $region7: #{tpu_custom_call.1} parent=1 // pred_check_branch
      %26 = sbr.rel (0) target = $region9
    $region8: #{tpu_custom_call.1} parent=1 // pred_region
      %s28 = ssub.s32 256, 256
      %29 = vsyncadd [#allocation7], %s28
      %s30 = sshll.u32 [#allocation6], 4
      %s31 = int_to_ptr.vmem [resolvable:$true] %s30
      %36 = dma.hbm_to_vmem [thread:$0]  %s1, 256, %s31, [#allocation7], 64, 64, 4
    $region9: #{tpu_custom_call.1} parent=1 // pred_fallthru
      _
    // Predicated region
    $region10: #{tpu_custom_call.1} parent=1 // pred_check
      _
    $region11: #{tpu_custom_call.1} parent=1 // pred_check_branch
      %38 = sbr.rel (0) target = $region13
    $region12: #{tpu_custom_call.1} parent=1 // pred_region
      _
    $region13: #{tpu_custom_call.1} parent=1 // pred_fallthru
      _
    // Predicated region
    $region14: #{tpu_custom_call.1} parent=1 // pred_check
      _
    $region15: #{tpu_custom_call.1} parent=1 // pred_check_branch
      %40 = sbr.rel (0) target = $region17
    $region16: #{tpu_custom_call.1} parent=1 // pred_region
      %s42 = ssub.s32 1024, 1024
      %43 = vsyncadd [#allocation7], %s42
      %s44 = sshll.u32 [#allocation8], 4
      %s45 = int_to_ptr.vmem [resolvable:$true] %s44
      %50 = dma.hbm_to_vmem [thread:$0]  %s3, 1024, %s45, [#allocation7], 64, 64, 4
    $region17: #{tpu_custom_call.1} parent=1 // pred_fallthru
      _
    // Predicated region
    $region18: #{tpu_custom_call.1} parent=1 // pred_check
      _
    $region19: #{tpu_custom_call.1} parent=1 // pred_check_branch
      %52 = sbr.rel (0) target = $region21
    $region20: #{tpu_custom_call.1} parent=1 // pred_region
      _
    $region21: #{tpu_custom_call.1} parent=1 // pred_fallthru
      _
    // Predicated region
    $region22: #{tpu_custom_call.1} parent=1 // pred_check
      _
    $region23: #{tpu_custom_call.1} parent=1 // pred_check_branch
      %54 = sbr.rel (0) target = $region25
    $region24: #{tpu_custom_call.1} parent=1 // pred_region
      %55 = dma.done [#allocation4], 128
    $region25: #{tpu_custom_call.1} parent=1 // pred_fallthru
      _
    // Predicated region
    $region26: #{tpu_custom_call.1} parent=1 // pred_check
      _
    $region27: #{tpu_custom_call.1} parent=1 // pred_check_branch
      %57 = sbr.rel (0) target = $region29
    $region28: #{tpu_custom_call.1} parent=1 // pred_region
      %58 = dma.done [#allocation7], 256
    $region29: #{tpu_custom_call.1} parent=1 // pred_fallthru
      _
    // Predicated region
    $region30: #{tpu_custom_call.1} parent=1 // pred_check
      _
    $region31: #{tpu_custom_call.1} parent=1 // pred_check_branch
      %60 = sbr.rel (0) target = $region33
    $region32: #{tpu_custom_call.1} parent=1 // pred_region
      %61 = dma.done [#allocation7], 1024
    $region33: #{tpu_custom_call.1} parent=1 // pred_fallthru
      _
    %p63 = scmp.eq.s32.totalorder 0, 0
    // Predicated region
    $region34: #{tpu_custom_call.1} parent=1 // pred_check
      %p64 = pneg %p63
    $region35: #{tpu_custom_call.1} parent=1 // pred_check_branch
      %66 = sbr.rel (%p64) target = $region37
    $region36: #{tpu_custom_call.1} parent=1 // pred_region
      %67 = vst [vmem:[#allocation2] sm:$0xff] 0.0
      %68 = vst [vmem:[#allocation2 + $0x8] sm:$0xff] 0.0
    $region37: #{tpu_custom_call.1} parent=1 // pred_fallthru
      _
    %v69 = vld [vmem:[#allocation3] sm:$0xf]
    %v70 = vld [vmem:[#allocation3 + $0x4] sm:$0xf]
    %v71 = vld [vmem:[#allocation6] sm:$0xf]
    %v72 = vld [vmem:[#allocation6 + $0x4] sm:$0xf]
    %v73 = vld [vmem:[#allocation6 + $0x8] sm:$0xf]
    %v74 = vld [vmem:[#allocation6 + $0xc] sm:$0xf]
    %v75 = vld [vmem:[%s2] sm:$0x1]
    %v77 = vlaneseq
    %v78 = vshrl.u32 %v77, 7
    %v79 = vsub.s32 0, %v78
    %v80 = vrot.slane %v75, %v79
    %v84 = vunpack.c.l.b16 %v69
    %v85 = vunpack.c.l.b16 %v70
    %v86 = vpack.c.b16 %v85, %v84
    %v91 = vunpack.c.l.b16 %v71
    %v92 = vunpack.c.l.b16 %v72
    %v93 = vunpack.c.l.b16 %v73
    %v94 = vunpack.c.l.b16 %v74
    %v95 = vpack.c.b16 %v92, %v91
    %v96 = vpack.c.b16 %v94, %v93
    %vm99 = vcmask 261120
    %v101 = vsel %vm99, %v86, 0
    %103 = vmatprep.subr.bf16.mxu0 0
    %104 = vmatpush1.bf16.msra.mxu0 %v95
    %105 = vmatprep.subr.bf16.mxu0 0
    %106 = vmatpush1.bf16.msra.mxu0 %v96
    %107 = vmatprep.subr.bf16.mxu0 0
    %108 = vmatpush1.bf16.msra.mxu0 0
    %109 = vmatprep.subr.bf16.mxu0 0
    %110 = vmatpush1.bf16.msra.mxu0 0
    %111 = vmatprep.subr.bf16.mxu0 0
    %112 = vmatpush1.bf16.msra.mxu0 0
    %113 = vmatprep.subr.bf16.mxu0 0
    %114 = vmatpush1.bf16.msra.mxu0 0
    %115 = vmatprep.subr.bf16.mxu0 0
    %116 = vmatpush1.bf16.msra.mxu0 0
    %117 = vmatprep.subr.bf16.mxu0 0
    %118 = vmatpush1.bf16.msra.mxu0 0
    %119 = vmatprep.subr.bf16.mxu0 0
    %120 = vmatpush1.bf16.msra.mxu0 0
    %121 = vmatprep.subr.bf16.mxu0 0
    %122 = vmatpush1.bf16.msra.mxu0 0
    %123 = vmatprep.subr.bf16.mxu0 0
    %124 = vmatpush1.bf16.msra.mxu0 0
    %125 = vmatprep.subr.bf16.mxu0 0
    %126 = vmatpush1.bf16.msra.mxu0 0
    %127 = vmatprep.subr.bf16.mxu0 0
    %128 = vmatpush1.bf16.msra.mxu0 0
    %129 = vmatprep.subr.bf16.mxu0 0
    %130 = vmatpush1.bf16.msra.mxu0 0
    %131 = vmatprep.subr.bf16.mxu0 0
    %132 = vmatpush1.bf16.msra.mxu0 0
    %133 = vmatprep.subr.bf16.mxu0 0
    %134 = vmatpush1.bf16.msra.mxu0 0
    %135 = vmatprep.mubr.bf16.mxu0 0
    %136 = vmatmul.mubr.bf16.gmra.mrb[0].mxu0 %v101
    %v137 = vpop.f32.mrb[0].mxu0
    %v138 = vadd.f32 %v80, %v137
    %v139 = vpop.f32.mrb[0].mxu0
    %v140 = vpop.f32.mrb[0].mxu0
    %v141 = vadd.f32 %v80, %v140
    %v142 = vpop.f32.mrb[0].mxu0
    %143 = vdwg.mxu0
    %v144 = vmul.f32 %v138, %v138
    %v145 = vmul.f32 %v141, %v141
    %v146 = vmul.f32 %v138, %v144
    %v147 = vmul.f32 %v141, %v145
    %v148 = vmul.f32 %v146, 0.044715
    %v149 = vmul.f32 %v147, 0.044715
    %v150 = vadd.f32 %v138, %v148
    %v151 = vadd.f32 %v141, %v149
    %v152 = vmul.f32 %v150, 0.7978846
    %v153 = vmul.f32 %v151, 0.7978846
    %v154 = vtanh.pop %v152
    %v155 = vtanh.pop %v153
    %v156 = vadd.f32 %v154, 1.0
    %v157 = vadd.f32 %v155, 1.0
    %v158 = vmul.f32 %v156, 0.5
    %v159 = vmul.f32 %v157, 0.5
    %v160 = vmul.f32 %v138, %v158
    %v161 = vmul.f32 %v141, %v159
    %v162 = vld [vmem:[#allocation2] sm:$0xff]
    %v163 = vld [vmem:[#allocation2 + $0x8] sm:$0xff]
    %v164 = vpack.c.bf16 %v161, %v160
    %v165 = vld [vmem:[#allocation8] sm:$0xf]
    %v166 = vld [vmem:[#allocation8 + $0x4] sm:$0xf]
    %v167 = vld [vmem:[#allocation8 + $0x8] sm:$0xf]
    %v168 = vld [vmem:[#allocation8 + $0xc] sm:$0xf]
    %v169 = vld [vmem:[#allocation8 + $0x10] sm:$0xf]
    %v170 = vld [vmem:[#allocation8 + $0x14] sm:$0xf]
    %v171 = vld [vmem:[#allocation8 + $0x18] sm:$0xf]
    %v172 = vld [vmem:[#allocation8 + $0x1c] sm:$0xf]
    %v173 = vld [vmem:[#allocation8 + $0x20] sm:$0xf]
    %v174 = vld [vmem:[#allocation8 + $0x24] sm:$0xf]
    %v175 = vld [vmem:[#allocation8 + $0x28] sm:$0xf]
    %v176 = vld [vmem:[#allocation8 + $0x2c] sm:$0xf]
    %v177 = vld [vmem:[#allocation8 + $0x30] sm:$0xf]
    %v178 = vld [vmem:[#allocation8 + $0x34] sm:$0xf]
    %v179 = vld [vmem:[#allocation8 + $0x38] sm:$0xf]
    %v180 = vld [vmem:[#allocation8 + $0x3c] sm:$0xf]
    %v197 = vunpack.c.l.b16 %v165
    %v198 = vunpack.c.l.b16 %v166
    %v199 = vunpack.c.l.b16 %v167
    %v200 = vunpack.c.l.b16 %v168
    %v201 = vunpack.c.l.b16 %v169
    %v202 = vunpack.c.l.b16 %v170
    %v203 = vunpack.c.l.b16 %v171
    %v204 = vunpack.c.l.b16 %v172
    %v205 = vunpack.c.l.b16 %v173
    %v206 = vunpack.c.l.b16 %v174
    %v207 = vunpack.c.l.b16 %v175
    %v208 = vunpack.c.l.b16 %v176
    %v209 = vunpack.c.l.b16 %v177
    %v210 = vunpack.c.l.b16 %v178
    %v211 = vunpack.c.l.b16 %v179
    %v212 = vunpack.c.l.b16 %v180
    %v213 = vpack.c.b16 %v198, %v197
    %v214 = vpack.c.b16 %v200, %v199
    %v215 = vpack.c.b16 %v202, %v201
    %v216 = vpack.c.b16 %v204, %v203
    %v217 = vpack.c.b16 %v206, %v205
    %v218 = vpack.c.b16 %v208, %v207
    %v219 = vpack.c.b16 %v210, %v209
    %v220 = vpack.c.b16 %v212, %v211
    %229 = vmatprep.subr.bf16.mxu0 0
    %230 = vmatpush1.bf16.msra.mxu0 %v213
    %231 = vmatprep.subr.bf16.mxu0 0
    %232 = vmatpush1.bf16.msra.mxu0 %v214
    %233 = vmatprep.subr.bf16.mxu0 0
    %234 = vmatpush1.bf16.msra.mxu0 %v215
    %235 = vmatprep.subr.bf16.mxu0 0
    %236 = vmatpush1.bf16.msra.mxu0 %v216
    %237 = vmatprep.subr.bf16.mxu0 0
    %238 = vmatpush1.bf16.msra.mxu0 %v217
    %239 = vmatprep.subr.bf16.mxu0 0
    %240 = vmatpush1.bf16.msra.mxu0 %v218
    %241 = vmatprep.subr.bf16.mxu0 0
    %242 = vmatpush1.bf16.msra.mxu0 %v219
    %243 = vmatprep.subr.bf16.mxu0 0
    %244 = vmatpush1.bf16.msra.mxu0 %v220
    %245 = vmatprep.subr.bf16.mxu0 0
    %246 = vmatpush1.bf16.msra.mxu0 0
    %247 = vmatprep.subr.bf16.mxu0 0
    %248 = vmatpush1.bf16.msra.mxu0 0
    %249 = vmatprep.subr.bf16.mxu0 0
    %250 = vmatpush1.bf16.msra.mxu0 0
    %251 = vmatprep.subr.bf16.mxu0 0
    %252 = vmatpush1.bf16.msra.mxu0 0
    %253 = vmatprep.subr.bf16.mxu0 0
    %254 = vmatpush1.bf16.msra.mxu0 0
    %255 = vmatprep.subr.bf16.mxu0 0
    %256 = vmatpush1.bf16.msra.mxu0 0
    %257 = vmatprep.subr.bf16.mxu0 0
    %258 = vmatpush1.bf16.msra.mxu0 0
    %259 = vmatprep.subr.bf16.mxu0 0
    %260 = vmatpush1.bf16.msra.mxu0 0
    %261 = vmatprep.mubr.bf16.mxu0 0
    %262 = vmatmul.mubr.bf16.gmra.mrb[0].mxu0 %v164
    %v263 = vpop.f32.mrb[0].mxu0
    %v264 = vadd.f32 0.0, %v263
    %v265 = vpop.f32.mrb[0].mxu0
    %v266 = vpop.f32.mrb[0].mxu0
    %v267 = vadd.f32 0.0, %v266
    %v268 = vpop.f32.mrb[0].mxu0
    %269 = vdwg.mxu0
    %v270 = vadd.f32 %v162, %v264
    %v271 = vadd.f32 %v163, %v267
    %272 = vst [vmem:[#allocation2] sm:$0xff] %v270
    %273 = vst [vmem:[#allocation2 + $0x8] sm:$0xff] %v271
    // Predicated region
    $region38: #{tpu_custom_call.1} parent=1 // pred_check
      %p274 = pneg %p63
    $region39: #{tpu_custom_call.1} parent=1 // pred_check_branch
      %276 = sbr.rel (%p274) target = $region41
    $region40: #{tpu_custom_call.1} parent=1 // pred_region
      %v277 = vld [vmem:[#allocation2] sm:$0xff]
      %v278 = vld [vmem:[#allocation2 + $0x8] sm:$0xff]
      %v279 = vld [vmem:[%s4] sm:$0x1]
      %v281 = vlaneseq
      %v282 = vshrl.u32 %v281, 7
      %v283 = vsub.s32 0, %v282
      %v284 = vrot.slane %v279, %v283
      %v286 = vadd.f32 %v277, %v284
      %v287 = vadd.f32 %v278, %v284
      %288 = vst [vmem:[#allocation9] sm:$0xff] %v286
      %289 = vst [vmem:[#allocation9 + $0x8] sm:$0xff] %v287
    $region41: #{tpu_custom_call.1} parent=1 // pred_fallthru
      _
    // Predicated region
    $region42: #{tpu_custom_call.1} parent=1 // pred_check
      _
    $region43: #{tpu_custom_call.1} parent=1 // pred_check_branch
      %291 = sbr.rel (0) target = $region45
    $region44: #{tpu_custom_call.1} parent=1 // pred_region
      %s293 = ssub.s32 256, 256
      %294 = vsyncadd [#allocation5], %s293
      %s295 = sshll.u32 [#allocation9], 4
      %s296 = int_to_ptr.vmem [resolvable:$true] %s295
      %301 = dma.vmem_to_hbm [thread:$0]  %s296, 256, %s5, [#allocation5], 128, 128, 8
    $region45: #{tpu_custom_call.1} parent=1 // pred_fallthru
      _
    // Predicated region
    $region46: #{tpu_custom_call.1} parent=1 // pred_check
      _
    $region47: #{tpu_custom_call.1} parent=1 // pred_check_branch
      %303 = sbr.rel (0) target = $region49
    $region48: #{tpu_custom_call.1} parent=1 // pred_region
      %304 = dma.done [#allocation5], 256
    $region49: #{tpu_custom_call.1} parent=1 // pred_fallthru
      _
    %305 = vsyncpa [#allocation4], 1
    %306 = vsyncpa [#allocation7], 1
    %307 = vsyncpa [#allocation5], 1

// kernel: tpu_custom_call.1
$region0: #{tpu_custom_call.1}
  #allocation0 [shape = 'u32[]', space=smem, size = 0x4, offset = 0x4, fixed_abs, tag = 'smem constant byte address 0x4 - core index']
  #allocation1 [shape = 'u32[144,128]{1,0:T(1,128)}', space=vmem, size = 0x12000, scoped, tag = 'internal scratch']
  #allocation2 [shape = 'f32[16,128]{1,0:T(8,128)}', space=vmem, size = 0x2000, scoped, tag = 'scratch operand']
  %s0 = inlined_call_operand.hbm [shape: bf16[16,32], index: 0, kind: input, shape index: {}]
  %s1 = inlined_call_operand.hbm [shape: bf16[32,128], index: 1, kind: input, shape index: {}]
  %s2 = inlined_call_operand.vmem [shape: f32[1,128], index: 2, kind: input, shape index: {}]
  %s3 = inlined_call_operand.hbm [shape: bf16[128,128], index: 3, kind: input, shape index: {}]
  %s4 = inlined_call_operand.vmem [shape: f32[1,128], index: 4, kind: input, shape index: {}]
  %s5 = inlined_call_operand.hbm [shape: f32[16,128], index: 5, kind: output, shape index: {}]
  %s6 = sld [smem:[#allocation0]]
  $region50: #{tpu_custom_call.1} parent=0
    _
  %s8 = ssub.s32 1, %s6
  %s9 = scalar_select 0, %s8, %s6
  $region1: #{tpu_custom_call.1} parent=0
    #allocation3 [shape = 'u8[4096]{0}', space=vmem, size = 0x1000, scoped, tag = 'input window, operand 0, single buffered']
    #allocation4 [shape = 's32[1]{0}', space=sflag, size = 0x4, scoped, tag = 'scoped memory for tpu_custom_call.1']
    #allocation5 [shape = 's32[1]{0}', space=sflag, size = 0x4, scoped, tag = 'scoped memory for tpu_custom_call.1']
    #allocation6 [shape = 'u8[8192]{0}', space=vmem, size = 0x2000, scoped, tag = 'input window, operand 1, single buffered']
    #allocation7 [shape = 's32[1]{0}', space=sflag, size = 0x4, scoped, tag = 'scoped memory for tpu_custom_call.1']
    #allocation8 [shape = 'u8[32768]{0}', space=vmem, size = 0x8000, scoped, tag = 'input window, operand 3, single buffered']
    #allocation9 [shape = 'u8[8192]{0}', space=vmem, size = 0x2000, scoped, tag = 'output window, operand 0, single buffered']
    %10 = vsyncpa [#allocation4], 0
    %11 = vsyncpa [#allocation7], 0
    %12 = vsyncpa [#allocation5], 0
    // Predicated region
    $region2: #{tpu_custom_call.1} parent=1 // pred_check
      _
    $region3: #{tpu_custom_call.1} parent=1 // pred_check_branch
      %14 = sbr.rel (0) target = $region5
    $region4: #{tpu_custom_call.1} parent=1 // pred_region
      %s16 = ssub.s32 128, 128
      %17 = vsyncadd [#allocation4], %s16
      %s18 = sshll.u32 [#allocation3], 4
      %s19 = int_to_ptr.vmem [resolvable:$true] %s18
      %24 = dma.hbm_to_vmem [thread:$0]  %s0, 128, %s19, [#allocation4], 64, 64, 4
    $region5: #{tpu_custom_call.1} parent=1 // pred_fallthru
      _
    // Predicated region
    $region6: #{tpu_custom_call.1} parent=1 // pred_check
      _
    $region7: #{tpu_custom_call.1} parent=1 // pred_check_branch
      %26 = sbr.rel (0) target = $region9
    $region8: #{tpu_custom_call.1} parent=1 // pred_region
      %s28 = ssub.s32 256, 256
      %29 = vsyncadd [#allocation7], %s28
      %s30 = sshll.u32 [#allocation6], 4
      %s31 = int_to_ptr.vmem [resolvable:$true] %s30
      %36 = dma.hbm_to_vmem [thread:$0]  %s1, 256, %s31, [#allocation7], 64, 64, 4
    $region9: #{tpu_custom_call.1} parent=1 // pred_fallthru
      _
    // Predicated region
    $region10: #{tpu_custom_call.1} parent=1 // pred_check
      _
    $region11: #{tpu_custom_call.1} parent=1 // pred_check_branch
      %38 = sbr.rel (0) target = $region13
    $region12: #{tpu_custom_call.1} parent=1 // pred_region
      _
    $region13: #{tpu_custom_call.1} parent=1 // pred_fallthru
      _
    // Predicated region
    $region14: #{tpu_custom_call.1} parent=1 // pred_check
      _
    $region15: #{tpu_custom_call.1} parent=1 // pred_check_branch
      %40 = sbr.rel (0) target = $region17
    $region16: #{tpu_custom_call.1} parent=1 // pred_region
      %s42 = ssub.s32 1024, 1024
      %43 = vsyncadd [#allocation7], %s42
      %s44 = sshll.u32 [#allocation8], 4
      %s45 = int_to_ptr.vmem [resolvable:$true] %s44
      %50 = dma.hbm_to_vmem [thread:$0]  %s3, 1024, %s45, [#allocation7], 64, 64, 4
    $region17: #{tpu_custom_call.1} parent=1 // pred_fallthru
      _
    // Predicated region
    $region18: #{tpu_custom_call.1} parent=1 // pred_check
      _
    $region19: #{tpu_custom_call.1} parent=1 // pred_check_branch
      %52 = sbr.rel (0) target = $region21
    $region20: #{tpu_custom_call.1} parent=1 // pred_region
      _
    $region21: #{tpu_custom_call.1} parent=1 // pred_fallthru
      _
    // Predicated region
    $region22: #{tpu_custom_call.1} parent=1 // pred_check
      _
    $region23: #{tpu_custom_call.1} parent=1 // pred_check_branch
      %54 = sbr.rel (0) target = $region25
    $region24: #{tpu_custom_call.1} parent=1 // pred_region
      %55 = dma.done [#allocation4], 128
    $region25: #{tpu_custom_call.1} parent=1 // pred_fallthru
      _
    // Predicated region
    $region26: #{tpu_custom_call.1} parent=1 // pred_check
      _
    $region27: #{tpu_custom_call.1} parent=1 // pred_check_branch
      %57 = sbr.rel (0) target = $region29
    $region28: #{tpu_custom_call.1} parent=1 // pred_region
      %58 = dma.done [#allocation7], 256
    $region29: #{tpu_custom_call.1} parent=1 // pred_fallthru
      _
    // Predicated region
    $region30: #{tpu_custom_call.1} parent=1 // pred_check
      _
    $region31: #{tpu_custom_call.1} parent=1 // pred_check_branch
      %60 = sbr.rel (0) target = $region33
    $region32: #{tpu_custom_call.1} parent=1 // pred_region
      %61 = dma.done [#allocation7], 1024
    $region33: #{tpu_custom_call.1} parent=1 // pred_fallthru
      _
    %p63 = scmp.eq.s32.totalorder 0, 0
    // Predicated region
    $region34: #{tpu_custom_call.1} parent=1 // pred_check
      %p64 = pneg %p63
    $region35: #{tpu_custom_call.1} parent=1 // pred_check_branch
      %66 = sbr.rel (%p64) target = $region37
    $region36: #{tpu_custom_call.1} parent=1 // pred_region
      %67 = vst [vmem:[#allocation2] sm:$0xff] 0.0
      %68 = vst [vmem:[#allocation2 + $0x8] sm:$0xff] 0.0
    $region37: #{tpu_custom_call.1} parent=1 // pred_fallthru
      _
    %v69 = vld [vmem:[#allocation3] sm:$0xf]
    %v70 = vld [vmem:[#allocation3 + $0x4] sm:$0xf]
    %v71 = vld [vmem:[#allocation6] sm:$0xf]
    %v72 = vld [vmem:[#allocation6 + $0x4] sm:$0xf]
    %v73 = vld [vmem:[#allocation6 + $0x8] sm:$0xf]
    %v74 = vld [vmem:[#allocation6 + $0xc] sm:$0xf]
    %v75 = vld [vmem:[%s2] sm:$0x1]
    %v77 = vlaneseq
    %v78 = vshrl.u32 %v77, 7
    %v79 = vsub.s32 0, %v78
    %v80 = vrot.slane %v75, %v79
    %v84 = vunpack.c.l.b16 %v69
    %v85 = vunpack.c.l.b16 %v70
    %v86 = vpack.c.b16 %v85, %v84
    %v91 = vunpack.c.l.b16 %v71
    %v92 = vunpack.c.l.b16 %v72
    %v93 = vunpack.c.l.b16 %v73
    %v94 = vunpack.c.l.b16 %v74
    %v95 = vpack.c.b16 %v92, %v91
    %v96 = vpack.c.b16 %v94, %v93
    %vm99 = vcmask 261120
    %v101 = vsel %vm99, %v86, 0
    %103 = vmatprep.subr.bf16.mxu0 0
    %104 = vmatpush1.bf16.msra.mxu0 %v95
    %105 = vmatprep.subr.bf16.mxu0 0
    %106 = vmatpush1.bf16.msra.mxu0 %v96
    %107 = vmatprep.subr.bf16.mxu0 0
    %108 = vmatpush1.bf16.msra.mxu0 0
    %109 = vmatprep.subr.bf16.mxu0 0
    %110 = vmatpush1.bf16.msra.mxu0 0
    %111 = vmatprep.subr.bf16.mxu0 0
    %112 = vmatpush1.bf16.msra.mxu0 0
    %113 = vmatprep.subr.bf16.mxu0 0
    %114 = vmatpush1.bf16.msra.mxu0 0
    %115 = vmatprep.subr.bf16.mxu0 0
    %116 = vmatpush1.bf16.msra.mxu0 0
    %117 = vmatprep.subr.bf16.mxu0 0
    %118 = vmatpush1.bf16.msra.mxu0 0
    %119 = vmatprep.subr.bf16.mxu0 0
    %120 = vmatpush1.bf16.msra.mxu0 0
    %121 = vmatprep.subr.bf16.mxu0 0
    %122 = vmatpush1.bf16.msra.mxu0 0
    %123 = vmatprep.subr.bf16.mxu0 0
    %124 = vmatpush1.bf16.msra.mxu0 0
    %125 = vmatprep.subr.bf16.mxu0 0
    %126 = vmatpush1.bf16.msra.mxu0 0
    %127 = vmatprep.subr.bf16.mxu0 0
    %128 = vmatpush1.bf16.msra.mxu0 0
    %129 = vmatprep.subr.bf16.mxu0 0
    %130 = vmatpush1.bf16.msra.mxu0 0
    %131 = vmatprep.subr.bf16.mxu0 0
    %132 = vmatpush1.bf16.msra.mxu0 0
    %133 = vmatprep.subr.bf16.mxu0 0
    %134 = vmatpush1.bf16.msra.mxu0 0
    %135 = vmatprep.mubr.bf16.mxu0 0
    %136 = vmatmul.mubr.bf16.gmra.mrb[0].mxu0 %v101
    %v137 = vpop.f32.mrb[0].mxu0
    %v138 = vadd.f32 %v80, %v137
    %v139 = vpop.f32.mrb[0].mxu0
    %v140 = vpop.f32.mrb[0].mxu0
    %v141 = vadd.f32 %v80, %v140
    %v142 = vpop.f32.mrb[0].mxu0
    %143 = vdwg.mxu0
    %v144 = vmul.f32 %v138, %v138
    %v145 = vmul.f32 %v141, %v141
    %v146 = vmul.f32 %v138, %v144
    %v147 = vmul.f32 %v141, %v145
    %v148 = vmul.f32 %v146, 0.044715
    %v149 = vmul.f32 %v147, 0.044715
    %v150 = vadd.f32 %v138, %v148
    %v151 = vadd.f32 %v141, %v149
    %v152 = vmul.f32 %v150, 0.7978846
    %v153 = vmul.f32 %v151, 0.7978846
    %v154 = vtanh.pop %v152
    %v155 = vtanh.pop %v153
    %v156 = vadd.f32 %v154, 1.0
    %v157 = vadd.f32 %v155, 1.0
    %v158 = vmul.f32 %v156, 0.5
    %v159 = vmul.f32 %v157, 0.5
    %v160 = vmul.f32 %v138, %v158
    %v161 = vmul.f32 %v141, %v159
    %v162 = vld [vmem:[#allocation2] sm:$0xff]
    %v163 = vld [vmem:[#allocation2 + $0x8] sm:$0xff]
    %v164 = vpack.c.bf16 %v161, %v160
    %v165 = vld [vmem:[#allocation8] sm:$0xf]
    %v166 = vld [vmem:[#allocation8 + $0x4] sm:$0xf]
    %v167 = vld [vmem:[#allocation8 + $0x8] sm:$0xf]
    %v168 = vld [vmem:[#allocation8 + $0xc] sm:$0xf]
    %v169 = vld [vmem:[#allocation8 + $0x10] sm:$0xf]
    %v170 = vld [vmem:[#allocation8 + $0x14] sm:$0xf]
    %v171 = vld [vmem:[#allocation8 + $0x18] sm:$0xf]
    %v172 = vld [vmem:[#allocation8 + $0x1c] sm:$0xf]
    %v173 = vld [vmem:[#allocation8 + $0x20] sm:$0xf]
    %v174 = vld [vmem:[#allocation8 + $0x24] sm:$0xf]
    %v175 = vld [vmem:[#allocation8 + $0x28] sm:$0xf]
    %v176 = vld [vmem:[#allocation8 + $0x2c] sm:$0xf]
    %v177 = vld [vmem:[#allocation8 + $0x30] sm:$0xf]
    %v178 = vld [vmem:[#allocation8 + $0x34] sm:$0xf]
    %v179 = vld [vmem:[#allocation8 + $0x38] sm:$0xf]
    %v180 = vld [vmem:[#allocation8 + $0x3c] sm:$0xf]
    %v197 = vunpack.c.l.b16 %v165
    %v198 = vunpack.c.l.b16 %v166
    %v199 = vunpack.c.l.b16 %v167
    %v200 = vunpack.c.l.b16 %v168
    %v201 = vunpack.c.l.b16 %v169
    %v202 = vunpack.c.l.b16 %v170
    %v203 = vunpack.c.l.b16 %v171
    %v204 = vunpack.c.l.b16 %v172
    %v205 = vunpack.c.l.b16 %v173
    %v206 = vunpack.c.l.b16 %v174
    %v207 = vunpack.c.l.b16 %v175
    %v208 = vunpack.c.l.b16 %v176
    %v209 = vunpack.c.l.b16 %v177
    %v210 = vunpack.c.l.b16 %v178
    %v211 = vunpack.c.l.b16 %v179
    %v212 = vunpack.c.l.b16 %v180
    %v213 = vpack.c.b16 %v198, %v197
    %v214 = vpack.c.b16 %v200, %v199
    %v215 = vpack.c.b16 %v202, %v201
    %v216 = vpack.c.b16 %v204, %v203
    %v217 = vpack.c.b16 %v206, %v205
    %v218 = vpack.c.b16 %v208, %v207
    %v219 = vpack.c.b16 %v210, %v209
    %v220 = vpack.c.b16 %v212, %v211
    %229 = vmatprep.subr.bf16.mxu0 0
    %230 = vmatpush1.bf16.msra.mxu0 %v213
    %231 = vmatprep.subr.bf16.mxu0 0
    %232 = vmatpush1.bf16.msra.mxu0 %v214
    %233 = vmatprep.subr.bf16.mxu0 0
    %234 = vmatpush1.bf16.msra.mxu0 %v215
    %235 = vmatprep.subr.bf16.mxu0 0
    %236 = vmatpush1.bf16.msra.mxu0 %v216
    %237 = vmatprep.subr.bf16.mxu0 0
    %238 = vmatpush1.bf16.msra.mxu0 %v217
    %239 = vmatprep.subr.bf16.mxu0 0
    %240 = vmatpush1.bf16.msra.mxu0 %v218
    %241 = vmatprep.subr.bf16.mxu0 0
    %242 = vmatpush1.bf16.msra.mxu0 %v219
    %243 = vmatprep.subr.bf16.mxu0 0
    %244 = vmatpush1.bf16.msra.mxu0 %v220
    %245 = vmatprep.subr.bf16.mxu0 0
    %246 = vmatpush1.bf16.msra.mxu0 0
    %247 = vmatprep.subr.bf16.mxu0 0
    %248 = vmatpush1.bf16.msra.mxu0 0
    %249 = vmatprep.subr.bf16.mxu0 0
    %250 = vmatpush1.bf16.msra.mxu0 0
    %251 = vmatprep.subr.bf16.mxu0 0
    %252 = vmatpush1.bf16.msra.mxu0 0
    %253 = vmatprep.subr.bf16.mxu0 0
    %254 = vmatpush1.bf16.msra.mxu0 0
    %255 = vmatprep.subr.bf16.mxu0 0
    %256 = vmatpush1.bf16.msra.mxu0 0
    %257 = vmatprep.subr.bf16.mxu0 0
    %258 = vmatpush1.bf16.msra.mxu0 0
    %259 = vmatprep.subr.bf16.mxu0 0
    %260 = vmatpush1.bf16.msra.mxu0 0
    %261 = vmatprep.mubr.bf16.mxu0 0
    %262 = vmatmul.mubr.bf16.gmra.mrb[0].mxu0 %v164
    %v263 = vpop.f32.mrb[0].mxu0
    %v264 = vadd.f32 0.0, %v263
    %v265 = vpop.f32.mrb[0].mxu0
    %v266 = vpop.f32.mrb[0].mxu0
    %v267 = vadd.f32 0.0, %v266
    %v268 = vpop.f32.mrb[0].mxu0
    %269 = vdwg.mxu0
    %v270 = vadd.f32 %v162, %v264
    %v271 = vadd.f32 %v163, %v267
    %272 = vst [vmem:[#allocation2] sm:$0xff] %v270
    %273 = vst [vmem:[#allocation2 + $0x8] sm:$0xff] %v271
    // Predicated region
    $region38: #{tpu_custom_call.1} parent=1 // pred_check
      %p274 = pneg %p63
    $region39: #{tpu_custom_call.1} parent=1 // pred_check_branch
      %276 = sbr.rel (%p274) target = $region41
    $region40: #{tpu_custom_call.1} parent=1 // pred_region
      %v277 = vld [vmem:[#allocation2] sm:$0xff]
      %v278 = vld [vmem:[#allocation2 + $0x8] sm:$0xff]
      %v279 = vld [vmem:[%s4] sm:$0x1]
      %v281 = vlaneseq
      %v282 = vshrl.u32 %v281, 7
      %v283 = vsub.s32 0, %v282
      %v284 = vrot.slane %v279, %v283
      %v286 = vadd.f32 %v277, %v284
      %v287 = vadd.f32 %v278, %v284
      %288 = vst [vmem:[#allocation9] sm:$0xff] %v286
      %289 = vst [vmem:[#allocation9 + $0x8] sm:$0xff] %v287
    $region41: #{tpu_custom_call.1} parent=1 // pred_fallthru
      _
    // Predicated region
    $region42: #{tpu_custom_call.1} parent=1 // pred_check
      _
    $region43: #{tpu_custom_call.1} parent=1 // pred_check_branch
      %291 = sbr.rel (0) target = $region45
    $region44: #{tpu_custom_call.1} parent=1 // pred_region
      %s293 = ssub.s32 256, 256
      %294 = vsyncadd [#allocation5], %s293
      %s295 = sshll.u32 [#allocation9], 4
      %s296 = int_to_ptr.vmem [resolvable:$true] %s295
      %301 = dma.vmem_to_hbm [thread:$0]  %s296, 256, %s5, [#allocation5], 128, 128, 8
    $region45: #{tpu_custom_call.1} parent=1 // pred_fallthru
      _
    // Predicated region
    $region46: #{tpu_custom_call.1} parent=1 // pred_check
      _
    $region47: #{tpu_custom_call.1} parent=1 // pred_check_branch
      %303 = sbr.rel (0) target = $region49
    $region48: #{tpu_custom_call.1} parent=1 // pred_region
      %304 = dma.done [#allocation5], 256
    $region49: #{tpu_custom_call.1} parent=1 // pred_fallthru
      _
    %305 = vsyncpa [#allocation4], 1
    %306 = vsyncpa [#allocation7], 1
    %307 = vsyncpa [#allocation5], 1

</llo_original>
